<compile_context>
chip_gen: v5e
topology: v5e:2x2
jax: 0.10.0
libtpu: 0.0.40
codegen_flags: <defaults>
</compile_context>

<pallas_src>
import jax
import jax.numpy as jnp
from jax.experimental import pallas as pl
from jax.experimental.pallas import tpu as pltpu


def _make_ca_net_kernel(z: int):
    """Kernel body, closing over the static noise_dim z (z*4 == 128 lanes)."""

    def ca_net_kernel(emb_ref, w_ref, b_ref, eps_ref, out_ref):
        # One MXU pass: (B, D) @ (D, 16z) -> (B, 16z), f32 accumulate.
        # Columns were pre-packed in the wrapper as
        #   [ valA(4z) | valB(4z) | gateA(4z) | gateB(4z) ]
        # with per-4z-block, z-wide chunk layouts:
        #   layout A: [ mu | mu | logvar | 0 ]     layout B: [ logvar | 0 | 0 | 0 ]
        h = jnp.dot(emb_ref[...], w_ref[...],
                    preferred_element_type=jnp.float32) + b_ref[...]

        half = h.shape[1] // 2                     # 8z (multiple of 128)
        val, gate = h[:, :half], h[:, half:]       # vreg-aligned slices (free)
        glu = val * jax.nn.sigmoid(gate)           # (B, 8z) = [ glu_A | glu_B ]

        blk = half // 2                            # 4z == 128 lanes
        add_term = glu[:, :blk]                    # [ mu | mu | logvar | 0 ]
        std_src = glu[:, blk:]                     # [ logvar | 0 | 0 | 0 ]

        # code lanes are [0, z): code = mu + eps * exp(0.5 * logvar)
        lane = jax.lax.broadcasted_iota(jnp.int32, add_term.shape, 1)
        code_term = jnp.where(lane < z,
                              eps_ref[...] * jnp.exp(0.5 * std_src),
                              0.0)

        # Single unmasked 128-lane store: [ code | mu | logvar | 0 ]
        out_ref[...] = add_term + code_term

    return ca_net_kernel


def pack_ca_net_params(w, b):
    """One-time layout plumbing (outside the kernel).

    w: (D, 4Z), b: (1, 4Z) with columns [v_mu | v_logvar | g_mu | g_logvar].
    Returns (w_packed (D, 16Z), b_packed (1, 16Z)) in the layout the kernel expects.
    """
    _, four_z = w.shape
    z = four_z // 4
    assert four_z == 4 * z and four_z == 128, (
        "packed layout assumes noise_dim * 4 == 128 (one lane width)")

    w_vmu, w_vlv = w[:, 0:z], w[:, z:2 * z]
    w_gmu, w_glv = w[:, 2 * z:3 * z], w[:, 3 * z:4 * z]
    b_vmu, b_vlv = b[:, 0:z], b[:, z:2 * z]
    b_gmu, b_glv = b[:, 2 * z:3 * z], b[:, 3 * z:4 * z]
    zw = jnp.zeros_like(w_vmu)
    zb = jnp.zeros_like(b_vmu)

    # layout A: [mu | mu | logvar | 0]     layout B: [logvar | 0 | 0 | 0]
    w_packed = jnp.concatenate(
        [w_vmu, w_vmu, w_vlv, zw,      # valA
         w_vlv, zw, zw, zw,            # valB
         w_gmu, w_gmu, w_glv, zw,      # gateA
         w_glv, zw, zw, zw],           # gateB
        axis=1)
    b_packed = jnp.concatenate(
        [b_vmu, b_vmu, b_vlv, zb,
         b_vlv, zb, zb, zb,
         b_gmu, b_gmu, b_glv, zb,
         b_glv, zb, zb, zb],
        axis=1)
    return w_packed, b_packed


def ca_net_forward(nn_emb, w_packed, b_packed, eps, noise_dim):
    """nn_emb: (B, img_dim), w_packed: (img_dim, 16Z), b_packed: (1, 16Z),
    eps: (B, Z).  Returns (code, mu, logvar), each (B, Z) f32."""
    B, _ = nn_emb.shape
    z = noise_dim
    lanes = 4 * z                                   # 128-wide packed output slab
    eps_packed = jnp.pad(eps, ((0, 0), (0, lanes - z)))   # eps in lanes [0, z)

    vmem = pl.BlockSpec(memory_space=pltpu.MemorySpace.VMEM)
    packed = pl.pallas_call(
        _make_ca_net_kernel(z),
        out_shape=jax.ShapeDtypeStruct((B, lanes), jnp.float32),
        in_specs=[vmem, vmem, vmem, vmem],
        out_specs=vmem,
    )(nn_emb, w_packed, b_packed, eps_packed)

    code = packed[:, 0:z]
    mu = packed[:, z:2 * z]
    logvar = packed[:, 2 * z:3 * z]
    return code, mu, logvar


def reference_forward(nn_emb, w, b, eps):
    h = nn_emb @ w + b
    two_z = h.shape[1] // 2
    glu = h[:, :two_z] * jax.nn.sigmoid(h[:, two_z:])
    z = two_z // 2
    mu = glu[:, :z]
    logvar = glu[:, z:]
    code = eps * jnp.exp(0.5 * logvar) + mu
    return code, mu, logvar


if __name__ == "__main__":
    # CA_NET(noise_dim=32, img_dim=32), batch=8 (small demo shapes)
    noise_dim = 32
    img_dim = 32
    batch = 8

    key = jax.random.PRNGKey(0)
    k_emb, k_w, k_b, k_eps = jax.random.split(key, 4)

    nn_emb = jax.random.normal(k_emb, (batch, img_dim), dtype=jnp.float32)
    # Deterministic synthetic "Linear" parameters (not a checkpoint).
    w = jax.random.normal(k_w, (img_dim, noise_dim * 4), dtype=jnp.float32) * 0.05
    b = jax.random.normal(k_b, (1, noise_dim * 4), dtype=jnp.float32) * 0.05
    # eps ~ N(0,1): torch draws it inside forward; here it is a deterministic input.
    eps = jax.random.normal(k_eps, (batch, noise_dim), dtype=jnp.float32)

    w_packed, b_packed = pack_ca_net_params(w, b)

    code, mu, logvar = ca_net_forward(nn_emb, w_packed, b_packed, eps, noise_dim)
    jax.block_until_ready((code, mu, logvar))

    code_r, mu_r, logvar_r = reference_forward(nn_emb, w, b, eps)
    assert jnp.allclose(code, code_r, atol=1e-5, rtol=1e-5)
    assert jnp.allclose(mu, mu_r, atol=1e-5, rtol=1e-5)
    assert jnp.allclose(logvar, logvar_r, atol=1e-5, rtol=1e-5)

    print("KERNEL_OK")
</pallas_src>

<mosaic_0001>
module attributes {stable_mosaic.version = 11 : i64} {
  func.func @ca_net_kernel(%arg0: memref<8x32xf32, #tpu.memory_space<vmem>>, %arg1: memref<32x512xf32, #tpu.memory_space<vmem>>, %arg2: memref<1x512xf32, #tpu.memory_space<vmem>>, %arg3: memref<8x128xf32, #tpu.memory_space<vmem>>, %arg4: memref<8x128xf32, #tpu.memory_space<vmem>>) attributes {dimension_semantics = [], scalar_prefetch = 0 : i64, scratch_operands = 0 : i64, tpu.core_type = #tpu.core_type<tc>} {
    %c0 = arith.constant 0 : index
    %c0_0 = arith.constant 0 : index
    %0 = vector.load %arg0[%c0, %c0_0] : memref<8x32xf32, #tpu.memory_space<vmem>>, vector<8x32xf32>
    %c0_1 = arith.constant 0 : index
    %c0_2 = arith.constant 0 : index
    %1 = vector.load %arg1[%c0_1, %c0_2] : memref<32x512xf32, #tpu.memory_space<vmem>>, vector<32x512xf32>
    %cst = arith.constant dense<0.000000e+00> : vector<8x512xf32>
    %2 = tpu.matmul %0, %1, %cst {dimension_numbers = #tpu.dot_dimension_numbers<[1], [0], [0], [1], [0, 0, 1, 1], [], []>} : vector<8x32xf32>, vector<32x512xf32>, vector<8x512xf32> -> vector<8x512xf32>
    %c0_3 = arith.constant 0 : index
    %c0_4 = arith.constant 0 : index
    %3 = vector.load %arg2[%c0_3, %c0_4] : memref<1x512xf32, #tpu.memory_space<vmem>>, vector<1x512xf32>
    %4 = vector.broadcast %3 : vector<1x512xf32> to vector<8x512xf32>
    %5 = arith.addf %2, %4 : vector<8x512xf32>
    %6 = vector.extract_strided_slice %5 {offsets = [0, 0], sizes = [8, 256], strides = [1, 1]} : vector<8x512xf32> to vector<8x256xf32>
    %7 = vector.extract_strided_slice %5 {offsets = [0, 256], sizes = [8, 256], strides = [1, 1]} : vector<8x512xf32> to vector<8x256xf32>
    %8 = arith.negf %7 : vector<8x256xf32>
    %9 = math.exp %8 : vector<8x256xf32>
    %cst_5 = arith.constant 1.000000e+00 : f32
    %10 = vector.broadcast %cst_5 : f32 to vector<8x256xf32>
    %11 = arith.addf %10, %9 : vector<8x256xf32>
    %12 = arith.divf %10, %11 : vector<8x256xf32>
    %13 = arith.mulf %6, %12 : vector<8x256xf32>
    %14 = vector.extract_strided_slice %13 {offsets = [0, 0], sizes = [8, 128], strides = [1, 1]} : vector<8x256xf32> to vector<8x128xf32>
    %15 = vector.extract_strided_slice %13 {offsets = [0, 128], sizes = [8, 128], strides = [1, 1]} : vector<8x256xf32> to vector<8x128xf32>
    %16 = tpu.iota {dimensions = array<i32: 1>} : vector<8x128xi32>
    %c32_i32 = arith.constant 32 : i32
    %17 = vector.broadcast %c32_i32 : i32 to vector<8x128xi32>
    %18 = arith.cmpi slt, %16, %17 : vector<8x128xi32>
    %c0_6 = arith.constant 0 : index
    %c0_7 = arith.constant 0 : index
    %19 = vector.load %arg3[%c0_6, %c0_7] : memref<8x128xf32, #tpu.memory_space<vmem>>, vector<8x128xf32>
    %cst_8 = arith.constant 5.000000e-01 : f32
    %20 = vector.broadcast %cst_8 : f32 to vector<8x128xf32>
    %21 = arith.mulf %20, %15 : vector<8x128xf32>
    %22 = math.exp %21 : vector<8x128xf32>
    %23 = arith.mulf %19, %22 : vector<8x128xf32>
    %cst_9 = arith.constant 0.000000e+00 : f32
    %24 = vector.broadcast %cst_9 : f32 to vector<8x128xf32>
    %25 = arith.select %18, %23, %24 : vector<8x128xi1>, vector<8x128xf32>
    %26 = arith.addf %14, %25 : vector<8x128xf32>
    %c0_10 = arith.constant 0 : index
    %c0_11 = arith.constant 0 : index
    %27 = vector.load %arg4[%c0_10, %c0_11] : memref<8x128xf32, #tpu.memory_space<vmem>>, vector<8x128xf32>
    tpu.vector_store %arg4[%c0_10, %c0_11], %26 {strides = array<i32>} : memref<8x128xf32, #tpu.memory_space<vmem>>, vector<8x128xf32>,
    return
  }
}

</mosaic_0001>

<llo_original>
// kernel: tpu_custom_call.1
$region0: #{tpu_custom_call.1}
  #allocation0 [shape = 'u32[]', space=smem, size = 0x4, offset = 0x4, fixed_abs, tag = 'smem constant byte address 0x4 - core index']
  #allocation1 [shape = 'u32[72,128]{1,0:T(1,128)}', space=vmem, size = 0x9000, scoped, tag = 'internal scratch']
  %s0 = inlined_call_operand.hbm [shape: f32[8,32], index: 0, kind: input, shape index: {}]
  %s1 = inlined_call_operand.hbm [shape: f32[32,512], index: 1, kind: input, shape index: {}]
  %s2 = inlined_call_operand.hbm [shape: f32[1,512], index: 2, kind: input, shape index: {}]
  %s3 = inlined_call_operand.hbm [shape: f32[8,128], index: 3, kind: input, shape index: {}]
  %s4 = inlined_call_operand.hbm [shape: f32[8,128], index: 4, kind: output, shape index: {}]
  %s5 = sld [smem:[#allocation0]]
  $region42: #{tpu_custom_call.1} parent=0
    _
  %s7 = ssub.s32 1, %s5
  %s8 = scalar_select 0, %s7, %s5
  $region1: #{tpu_custom_call.1} parent=0
    #allocation2 [shape = 'u8[4096]{0}', space=vmem, size = 0x1000, scoped, tag = 'input window, operand 0, single buffered']
    #allocation3 [shape = 's32[1]{0}', space=sflag, size = 0x4, scoped, tag = 'scoped memory for tpu_custom_call.1']
    #allocation4 [shape = 's32[1]{0}', space=sflag, size = 0x4, scoped, tag = 'scoped memory for tpu_custom_call.1']
    #allocation5 [shape = 'u8[65536]{0}', space=vmem, size = 0x10000, scoped, tag = 'input window, operand 1, single buffered']
    #allocation6 [shape = 's32[1]{0}', space=sflag, size = 0x4, scoped, tag = 'scoped memory for tpu_custom_call.1']
    #allocation7 [shape = 'u8[2048]{0}', space=vmem, size = 0x800, scoped, tag = 'input window, operand 2, single buffered']
    #allocation8 [shape = 'u8[4096]{0}', space=vmem, size = 0x1000, scoped, tag = 'input window, operand 3, single buffered']
    #allocation9 [shape = 's32[1]{0}', space=sflag, size = 0x4, scoped, tag = 'scoped memory for tpu_custom_call.1']
    #allocation10 [shape = 'u8[4096]{0}', space=vmem, size = 0x1000, scoped, tag = 'output window, operand 0, single buffered']
    %9 = vsyncpa [#allocation3], 0
    %10 = vsyncpa [#allocation6], 0
    %11 = vsyncpa [#allocation9], 0
    %12 = vsyncpa [#allocation4], 0
    // Predicated region
    $region2: #{tpu_custom_call.1} parent=1 // pred_check
      _
    $region3: #{tpu_custom_call.1} parent=1 // pred_check_branch
      %14 = sbr.rel (0) target = $region5
    $region4: #{tpu_custom_call.1} parent=1 // pred_region
      %16 = vsyncadd [#allocation3], 0
      %s18 = sshll.u32 %s0, 4
      %s19 = int_to_ptr.hbm [resolvable:$true] %s18
      %s20 = sshll.u32 [#allocation2], 4
      %s21 = int_to_ptr.vmem [resolvable:$true] %s20
      %23 = dma.hbm_to_vmem [thread:$0]  %s19, 128, %s21, [#allocation3]
    $region5: #{tpu_custom_call.1} parent=1 // pred_fallthru
      _
    // Predicated region
    $region6: #{tpu_custom_call.1} parent=1 // pred_check
      _
    $region7: #{tpu_custom_call.1} parent=1 // pred_check_branch
      %25 = sbr.rel (0) target = $region9
    $region8: #{tpu_custom_call.1} parent=1 // pred_region
      %27 = vsyncadd [#allocation6], 0
      %s28 = sshll.u32 %s1, 4
      %s29 = int_to_ptr.hbm [resolvable:$true] %s28
      %s30 = sshll.u32 [#allocation5], 4
      %s31 = int_to_ptr.vmem [resolvable:$true] %s30
      %36 = dma.hbm_to_vmem [thread:$0]  %s29, 2048, %s31, [#allocation6], 512, 512, 32
    $region9: #{tpu_custom_call.1} parent=1 // pred_fallthru
      _
    // Predicated region
    $region10: #{tpu_custom_call.1} parent=1 // pred_check
      _
    $region11: #{tpu_custom_call.1} parent=1 // pred_check_branch
      %38 = sbr.rel (0) target = $region13
    $region12: #{tpu_custom_call.1} parent=1 // pred_region
      %40 = vsyncadd [#allocation6], 0
      %s42 = sshll.u32 %s2, 4
      %s43 = int_to_ptr.hbm [resolvable:$true] %s42
      %s44 = sshll.u32 [#allocation7], 4
      %s45 = int_to_ptr.vmem [resolvable:$true] %s44
      %47 = dma.hbm_to_vmem [thread:$0]  %s43, 64, %s45, [#allocation6]
    $region13: #{tpu_custom_call.1} parent=1 // pred_fallthru
      _
    // Predicated region
    $region14: #{tpu_custom_call.1} parent=1 // pred_check
      _
    $region15: #{tpu_custom_call.1} parent=1 // pred_check_branch
      %49 = sbr.rel (0) target = $region17
    $region16: #{tpu_custom_call.1} parent=1 // pred_region
      %51 = vsyncadd [#allocation9], 0
      %s53 = sshll.u32 %s3, 4
      %s54 = int_to_ptr.hbm [resolvable:$true] %s53
      %s55 = sshll.u32 [#allocation8], 4
      %s56 = int_to_ptr.vmem [resolvable:$true] %s55
      %58 = dma.hbm_to_vmem [thread:$0]  %s54, 128, %s56, [#allocation9]
    $region17: #{tpu_custom_call.1} parent=1 // pred_fallthru
      _
    // Predicated region
    $region18: #{tpu_custom_call.1} parent=1 // pred_check
      _
    $region19: #{tpu_custom_call.1} parent=1 // pred_check_branch
      %60 = sbr.rel (0) target = $region21
    $region20: #{tpu_custom_call.1} parent=1 // pred_region
      %62 = dma.done [#allocation3], 128
    $region21: #{tpu_custom_call.1} parent=1 // pred_fallthru
      _
    // Predicated region
    $region22: #{tpu_custom_call.1} parent=1 // pred_check
      _
    $region23: #{tpu_custom_call.1} parent=1 // pred_check_branch
      %64 = sbr.rel (0) target = $region25
    $region24: #{tpu_custom_call.1} parent=1 // pred_region
      %66 = dma.done [#allocation6], 2048
    $region25: #{tpu_custom_call.1} parent=1 // pred_fallthru
      _
    // Predicated region
    $region26: #{tpu_custom_call.1} parent=1 // pred_check
      _
    $region27: #{tpu_custom_call.1} parent=1 // pred_check_branch
      %68 = sbr.rel (0) target = $region29
    $region28: #{tpu_custom_call.1} parent=1 // pred_region
      %70 = dma.done [#allocation6], 64
    $region29: #{tpu_custom_call.1} parent=1 // pred_fallthru
      _
    // Predicated region
    $region30: #{tpu_custom_call.1} parent=1 // pred_check
      _
    $region31: #{tpu_custom_call.1} parent=1 // pred_check_branch
      %72 = sbr.rel (0) target = $region33
    $region32: #{tpu_custom_call.1} parent=1 // pred_region
      %74 = dma.done [#allocation9], 128
    $region33: #{tpu_custom_call.1} parent=1 // pred_fallthru
      _
    %v75 = vld [vmem:[#allocation2] sm:$0xff]
    %v76 = vld [vmem:[#allocation5] sm:$0xff]
    %v77 = vld [vmem:[#allocation5 + $0x8] sm:$0xff]
    %v78 = vld [vmem:[#allocation5 + $0x10] sm:$0xff]
    %v79 = vld [vmem:[#allocation5 + $0x18] sm:$0xff]
    %v80 = vld [vmem:[#allocation5 + $0x20] sm:$0xff]
    %v81 = vld [vmem:[#allocation5 + $0x28] sm:$0xff]
    %v82 = vld [vmem:[#allocation5 + $0x30] sm:$0xff]
    %v83 = vld [vmem:[#allocation5 + $0x38] sm:$0xff]
    %v84 = vld [vmem:[#allocation5 + $0x40] sm:$0xff]
    %v85 = vld [vmem:[#allocation5 + $0x48] sm:$0xff]
    %v86 = vld [vmem:[#allocation5 + $0x50] sm:$0xff]
    %v87 = vld [vmem:[#allocation5 + $0x58] sm:$0xff]
    %v88 = vld [vmem:[#allocation5 + $0x60] sm:$0xff]
    %v89 = vld [vmem:[#allocation5 + $0x68] sm:$0xff]
    %v90 = vld [vmem:[#allocation5 + $0x70] sm:$0xff]
    %v91 = vld [vmem:[#allocation5 + $0x78] sm:$0xff]
    %v92 = vld [vmem:[#allocation7] sm:$0xf]
    %v94 = vperm.slane %v92, 0
    %v95 = vperm.slane %v92, 1
    %v96 = vperm.slane %v92, 2
    %v97 = vperm.slane %v92, 3
    %vm102 = vcmask 261120
    %v104 = vsel %vm102, %v75, 0
    %106 = vmatpush.msra.mxu0 0.0
    %107 = vmatpush.msra.mxu0 0.0
    %108 = vmatpush.msra.mxu0 0.0
    %109 = vmatpush.msra.mxu0 0.0
    %110 = vmatpush.msra.mxu0 0.0
    %111 = vmatpush.msra.mxu0 0.0
    %112 = vmatpush.msra.mxu0 0.0
    %113 = vmatpush.msra.mxu0 0.0
    %114 = vmatpush.msra.mxu0 0.0
    %115 = vmatpush.msra.mxu0 0.0
    %116 = vmatpush.msra.mxu0 0.0
    %117 = vmatpush.msra.mxu0 0.0
    %118 = vmatpush.msra.mxu0 %v88
    %119 = vmatpush.msra.mxu0 %v84
    %120 = vmatpush.msra.mxu0 %v80
    %121 = vmatpush.msra.mxu0 %v76
    %122 = vmatmul.f32.gmra.mxu0 %v104
    %v123 = vpop.f32.mrf.mxu0
    %v124 = vadd.f32 %v94, %v123
    %125 = vdwg.mxu0
    %126 = vmatpush.msra.mxu0 0.0
    %127 = vmatpush.msra.mxu0 0.0
    %128 = vmatpush.msra.mxu0 0.0
    %129 = vmatpush.msra.mxu0 0.0
    %130 = vmatpush.msra.mxu0 0.0
    %131 = vmatpush.msra.mxu0 0.0
    %132 = vmatpush.msra.mxu0 0.0
    %133 = vmatpush.msra.mxu0 0.0
    %134 = vmatpush.msra.mxu0 0.0
    %135 = vmatpush.msra.mxu0 0.0
    %136 = vmatpush.msra.mxu0 0.0
    %137 = vmatpush.msra.mxu0 0.0
    %138 = vmatpush.msra.mxu0 %v89
    %139 = vmatpush.msra.mxu0 %v85
    %140 = vmatpush.msra.mxu0 %v81
    %141 = vmatpush.msra.mxu0 %v77
    %142 = vmatmul.f32.gmra.mxu0 %v104
    %v143 = vpop.f32.mrf.mxu0
    %v144 = vadd.f32 %v95, %v143
    %145 = vdwg.mxu0
    %146 = vmatpush.msra.mxu0 0.0
    %147 = vmatpush.msra.mxu0 0.0
    %148 = vmatpush.msra.mxu0 0.0
    %149 = vmatpush.msra.mxu0 0.0
    %150 = vmatpush.msra.mxu0 0.0
    %151 = vmatpush.msra.mxu0 0.0
    %152 = vmatpush.msra.mxu0 0.0
    %153 = vmatpush.msra.mxu0 0.0
    %154 = vmatpush.msra.mxu0 0.0
    %155 = vmatpush.msra.mxu0 0.0
    %156 = vmatpush.msra.mxu0 0.0
    %157 = vmatpush.msra.mxu0 0.0
    %158 = vmatpush.msra.mxu0 %v90
    %159 = vmatpush.msra.mxu0 %v86
    %160 = vmatpush.msra.mxu0 %v82
    %161 = vmatpush.msra.mxu0 %v78
    %162 = vmatmul.f32.gmra.mxu0 %v104
    %v163 = vpop.f32.mrf.mxu0
    %v164 = vadd.f32 %v96, %v163
    %165 = vdwg.mxu0
    %166 = vmatpush.msra.mxu0 0.0
    %167 = vmatpush.msra.mxu0 0.0
    %168 = vmatpush.msra.mxu0 0.0
    %169 = vmatpush.msra.mxu0 0.0
    %170 = vmatpush.msra.mxu0 0.0
    %171 = vmatpush.msra.mxu0 0.0
    %172 = vmatpush.msra.mxu0 0.0
    %173 = vmatpush.msra.mxu0 0.0
    %174 = vmatpush.msra.mxu0 0.0
    %175 = vmatpush.msra.mxu0 0.0
    %176 = vmatpush.msra.mxu0 0.0
    %177 = vmatpush.msra.mxu0 0.0
    %178 = vmatpush.msra.mxu0 %v91
    %179 = vmatpush.msra.mxu0 %v87
    %180 = vmatpush.msra.mxu0 %v83
    %181 = vmatpush.msra.mxu0 %v79
    %182 = vmatmul.f32.gmra.mxu0 %v104
    %v183 = vpop.f32.mrf.mxu0
    %v184 = vadd.f32 %v97, %v183
    %185 = vdwg.mxu0
    %v186 = vxor.u32 %v164, 2147483648
    %v187 = vxor.u32 %v184, 2147483648
    %v188 = vmul.f32 %v186, 1.442695
    %v189 = vpow.pop %v188
    %v190 = vmul.f32 %v187, 1.442695
    %v191 = vpow.pop %v190
    %v192 = vadd.f32 %v189, 1.0
    %v193 = vadd.f32 %v191, 1.0
    %v194 = vrcp.pop %v192
    %v195 = vmul.f32 %v192, %v194
    %v196 = vsub.f32 1.0, %v195
    %v197 = vmul.f32 %v194, %v196
    %v198 = vadd.f32 %v194, %v197
    %vm199 = vweird.f32 %v192
    %vm200 = vweird.f32 %v194
    %vm201 = vmor %vm199, %vm200
    %v202 = vsel %vm201, %v194, %v198
    %v203 = vand.u32 2147483647, %v192
    %vm204 = vcmp.eq.f32.partialorder %v203, 8.507059e+37
    %v205 = vand.u32 %v192, 2147483648
    %v206 = vor.u32 1.1754944e-38, %v205
    %v207 = vsel %vm204, %v206, %v202
    %v208 = vmul.f32 1.0, %v207
    %v209 = vrcp.pop %v193
    %v210 = vmul.f32 %v193, %v209
    %v211 = vsub.f32 1.0, %v210
    %v212 = vmul.f32 %v209, %v211
    %v213 = vadd.f32 %v209, %v212
    %vm214 = vweird.f32 %v193
    %vm215 = vweird.f32 %v209
    %vm216 = vmor %vm214, %vm215
    %v217 = vsel %vm216, %v209, %v213
    %v218 = vand.u32 2147483647, %v193
    %vm219 = vcmp.eq.f32.partialorder %v218, 8.507059e+37
    %v220 = vand.u32 %v193, 2147483648
    %v221 = vor.u32 1.1754944e-38, %v220
    %v222 = vsel %vm219, %v221, %v217
    %v223 = vmul.f32 1.0, %v222
    %v224 = vmul.f32 %v124, %v208
    %v225 = vmul.f32 %v144, %v223
    %v226 = vlaneseq
    %v227 = vand.u32 %v226, 127
    %vm228 = vcmp.lt.s32.totalorder %v227, 32
    %v229 = vld [vmem:[#allocation8] sm:$0xff]
    %v230 = vmul.f32 %v225, 0.5
    %v231 = vmul.f32 %v230, 1.442695
    %v232 = vpow.pop %v231
    %v233 = vmul.f32 %v229, %v232
    %v234 = vsel %vm228, %v233, 0.0
    %v235 = vadd.f32 %v224, %v234
    %236 = vst [vmem:[#allocation10] sm:$0xff] %v235
    // Predicated region
    $region34: #{tpu_custom_call.1} parent=1 // pred_check
      _
    $region35: #{tpu_custom_call.1} parent=1 // pred_check_branch
      %238 = sbr.rel (0) target = $region37
    $region36: #{tpu_custom_call.1} parent=1 // pred_region
      %240 = vsyncadd [#allocation4], 0
      %s242 = sshll.u32 [#allocation10], 4
      %s243 = int_to_ptr.vmem [resolvable:$true] %s242
      %s244 = sshll.u32 %s4, 4
      %s245 = int_to_ptr.hbm [resolvable:$true] %s244
      %247 = dma.vmem_to_hbm [thread:$0]  %s243, 128, %s245, [#allocation4]
    $region37: #{tpu_custom_call.1} parent=1 // pred_fallthru
      _
    // Predicated region
    $region38: #{tpu_custom_call.1} parent=1 // pred_check
      _
    $region39: #{tpu_custom_call.1} parent=1 // pred_check_branch
      %249 = sbr.rel (0) target = $region41
    $region40: #{tpu_custom_call.1} parent=1 // pred_region
      %251 = dma.done [#allocation4], 128
    $region41: #{tpu_custom_call.1} parent=1 // pred_fallthru
      _
    %252 = vsyncpa [#allocation3], 1
    %253 = vsyncpa [#allocation6], 1
    %254 = vsyncpa [#allocation9], 1
    %255 = vsyncpa [#allocation4], 1

</llo_original>
